<compile_context>
chip_gen: v5e
topology: v5e:2x2
jax: 0.10.0
libtpu: 0.0.40
codegen_flags: <defaults>
</compile_context>

<pallas_src>
import functools

import numpy as np
import jax
import jax.numpy as jnp
from jax.experimental import pallas as pl
from jax.experimental.pallas import tpu as pltpu


# Safe on every generation: v5e/v6e have 128 MiB physical VMEM, v7x has 64 MiB
# (32 MiB scoped default).  Worst-case double-buffered tiles here are ~10 MiB.
_VMEM_LIMIT_BYTES = 32 * 1024 * 1024

_MULTI_TC_CACHE = None


def _is_multi_tc():
    """True only on 2-TensorCore parts (v7x).  On v5e/v6e a forced grid split is
    pure per-step overhead, so we skip it there."""
    global _MULTI_TC_CACHE
    if _MULTI_TC_CACHE is None:
        try:
            kind = jax.devices()[0].device_kind.lower().replace(" ", "")
        except Exception:
            kind = ""
        _MULTI_TC_CACHE = ("v7" in kind) or ("tpu7" in kind)
    return _MULTI_TC_CACHE


# ---------------------------------------------------------------------------
# Pallas kernel: tiled matmul with fused epilogue (bias / BN affine / residual / ReLU)
# ---------------------------------------------------------------------------

def _matmul_fused_kernel(*refs, relu_mode, has_residual, multi_k):
    """acc = A @ B (bf16 x bf16 -> f32), then:
         relu_mode == "pre" : out = relu(acc + bias) * scale + shift
         relu_mode == "post": out = relu(acc + bias [+ res])
         relu_mode == "none": out =      acc + bias [+ res]
    multi_k=False: single K step, no scratch, no pl.when gating."""
    has_affine = relu_mode == "pre"
    a_ref, b_ref, bias_ref = refs[0], refs[1], refs[2]
    pos = 3
    scale_ref = shift_ref = res_ref = None
    if has_affine:
        scale_ref, shift_ref = refs[pos], refs[pos + 1]
        pos += 2
    if has_residual:
        res_ref = refs[pos]
        pos += 1
    o_ref = refs[pos]

    def epilogue(acc):
        acc = acc + bias_ref[...]
        if has_affine:
            acc = jnp.maximum(acc, 0.0) * scale_ref[...] + shift_ref[...]
        else:
            if has_residual:
                acc = acc + res_ref[...].astype(jnp.float32)
            if relu_mode == "post":
                acc = jnp.maximum(acc, 0.0)
        o_ref[...] = acc.astype(o_ref.dtype)

    if multi_k:
        acc_ref = refs[pos + 1]

        @pl.when(pl.program_id(2) == 0)
        def _():
            acc_ref[...] = jnp.zeros_like(acc_ref)

        acc_ref[...] += jnp.dot(a_ref[...], b_ref[...],
                                preferred_element_type=jnp.float32)

        @pl.when(pl.program_id(2) == pl.num_programs(2) - 1)
        def _():
            epilogue(acc_ref[...])
    else:
        epilogue(jnp.dot(a_ref[...], b_ref[...],
                         preferred_element_type=jnp.float32))


def _round_up(x, m):
    return (x + m - 1) // m * m


def _largest_divisor_tile(total, unit, cap):
    """Largest multiple of `unit` that divides `total` and is <= cap."""
    n = total // unit
    best = 1
    for d in range(1, n + 1):
        if n % d == 0 and d * unit <= cap:
            best = d
    return best * unit


def matmul_fused(a, b, bias, scale=None, shift=None, residual=None,
                 relu_mode="none", out_dtype=jnp.float32, keep_n_padding=False):
    """a:(M,K) b:(K,N) bias/scale/shift:(N,) residual:(M,<=Np) -> (M,N or Np).

    A/B (and residual) go to the MXU in bfloat16; accumulation and the epilogue are
    float32; the output is written in `out_dtype` (bf16 for all conv layers)."""
    assert relu_mode in ("none", "post", "pre")
    has_affine = relu_mode == "pre"
    has_residual = residual is not None
    assert not (has_affine and has_residual)

    M, K = a.shape
    K2, N = b.shape
    assert K == K2

    Mp = _round_up(M, 16)    # bf16 sublane packing of A / out
    Kp = _round_up(K, 128)
    Np = _round_up(N, 128)

    tm = _largest_divisor_tile(Mp, 16, 512)
    tk = _largest_divisor_tile(Kp, 128, 4608)   # every conv here: a single K step
    tn = _largest_divisor_tile(Np, 128, 512)

    # v7x only: ensure >=2 "parallel" tiles for medium/large matmuls, preferring an
    # N split (keeps the 256-row MXU LHS feed wide); skip tiny matmuls entirely.
    if _is_multi_tc() and (Mp // tm) * (Np // tn) < 2 and M >= 256:
        if tn >= 256:
            tn = _largest_divisor_tile(Np, 128, tn // 2)
        elif tm >= 32:
            tm = _largest_divisor_tile(Mp, 16, tm // 2)

    multi_k = (Kp // tk) > 1

    a_p = jnp.pad(a.astype(jnp.bfloat16), ((0, Mp - M), (0, Kp - K)))
    b_p = jnp.pad(b.astype(jnp.bfloat16), ((0, Kp - K), (0, Np - N)))
    bias_p = jnp.pad(bias.astype(jnp.float32), (0, Np - N)).reshape(1, Np)

    if multi_k:
        a_map = lambda i, j, k: (i, k)
        b_map = lambda i, j, k: (k, j)
        o_map = lambda i, j, k: (i, j)
        v_map = lambda i, j, k: (0, j)
        grid = (Mp // tm, Np // tn, Kp // tk)
        scratch = [pltpu.VMEM((tm, tn), jnp.float32)]
        sem = ("parallel", "parallel", "arbitrary")
    else:
        a_map = lambda i, j: (i, 0)
        b_map = lambda i, j: (0, j)
        o_map = lambda i, j: (i, j)
        v_map = lambda i, j: (0, j)
        grid = (Mp // tm, Np // tn)
        scratch = []
        sem = ("parallel", "parallel")

    operands = [a_p, b_p, bias_p]
    in_specs = [
        pl.BlockSpec((tm, tk), a_map),
        pl.BlockSpec((tk, tn), b_map),
        pl.BlockSpec((1, tn), v_map),
    ]
    if has_affine:
        operands.append(
            jnp.pad(scale.astype(jnp.float32), (0, Np - N)).reshape(1, Np))
        operands.append(
            jnp.pad(shift.astype(jnp.float32), (0, Np - N)).reshape(1, Np))
        in_specs += [pl.BlockSpec((1, tn), v_map)] * 2
    if has_residual:
        rM, rN = residual.shape
        operands.append(jnp.pad(residual.astype(jnp.bfloat16),
                                ((0, Mp - rM), (0, Np - rN))))
        in_specs.append(pl.BlockSpec((tm, tn), o_map))

    out = pl.pallas_call(
        functools.partial(_matmul_fused_kernel, relu_mode=relu_mode,
                          has_residual=has_residual, multi_k=multi_k),
        out_shape=jax.ShapeDtypeStruct((Mp, Np), out_dtype),
        grid_spec=pltpu.PrefetchScalarGridSpec(
            num_scalar_prefetch=0,
            grid=grid,
            in_specs=in_specs,
            out_specs=pl.BlockSpec((tm, tn), o_map),
            scratch_shapes=scratch,
        ),
        compiler_params=pltpu.CompilerParams(
            dimension_semantics=sem,
            vmem_limit_bytes=_VMEM_LIMIT_BYTES),
    )(*operands)

    if Mp != M:
        out = out[:M]
    if (not keep_n_padding) and Np != N:
        out = out[:, :N]
    return out


# ---------------------------------------------------------------------------
# Pallas kernel: fc_dim_reduce -> relu -> bn5 -> (fc_trans | fc_rot), all fused
# ---------------------------------------------------------------------------

def _fc_heads_kernel(x_ref, w1_ref, b1_ref, s_ref, t_ref, w2_ref, b2_ref,
                     o_ref, acc_ref):
    k = pl.program_id(0)

    @pl.when(k == 0)
    def _():
        acc_ref[...] = jnp.zeros_like(acc_ref)

    acc_ref[...] += jnp.dot(x_ref[...], w1_ref[...],
                            preferred_element_type=jnp.float32)

    @pl.when(k == pl.num_programs(0) - 1)
    def _():
        # bn5(relu(fc_dim_reduce(x))) — kept in f32 for the head chain.
        x_lin = (jnp.maximum(acc_ref[...] + b1_ref[...], 0.0) * s_ref[...]
                 + t_ref[...])
        # TODO(synk): F.dropout(p=0.5, training=...) skipped — eval-mode identity.
        o_ref[...] = (jnp.dot(x_lin, w2_ref[...],
                              preferred_element_type=jnp.float32)
                      + b2_ref[...]).astype(o_ref.dtype)


def fc_heads_fused(x_flat, w1, b1, scale, shift, w_heads, b_heads):
    """x_flat:(B,K)  w1:(1024,K)  w_heads:(7,1024) -> (B,7) float32, one pallas_call."""
    B, K = x_flat.shape
    N1 = w1.shape[0]                 # 1024 (multiple of 128)
    N2 = w_heads.shape[0]            # 7
    Mp = _round_up(B, 16)
    Kp = _round_up(K, 128)
    N2p = _round_up(N2, 128)
    tk = _largest_divisor_tile(Kp, 128, 2048)

    x_p = jnp.pad(x_flat.astype(jnp.bfloat16), ((0, Mp - B), (0, Kp - K)))
    w1_p = jnp.pad(w1.T.astype(jnp.bfloat16), ((0, Kp - K), (0, 0)))      # (Kp, N1)
    b1_p = b1.astype(jnp.float32).reshape(1, N1)
    s_p = scale.astype(jnp.float32).reshape(1, N1)
    t_p = shift.astype(jnp.float32).reshape(1, N1)
    w2_p = jnp.pad(w_heads.T.astype(jnp.float32), ((0, 0), (0, N2p - N2)))  # (N1, N2p)
    b2_p = jnp.pad(b_heads.astype(jnp.float32), (0, N2p - N2)).reshape(1, N2p)

    out = pl.pallas_call(
        _fc_heads_kernel,
        out_shape=jax.ShapeDtypeStruct((Mp, N2p), jnp.float32),
        grid_spec=pltpu.PrefetchScalarGridSpec(
            num_scalar_prefetch=0,
            grid=(Kp // tk,),
            in_specs=[
                pl.BlockSpec((Mp, tk), lambda k: (0, k)),
                pl.BlockSpec((tk, N1), lambda k: (k, 0)),
                pl.BlockSpec((1, N1), lambda k: (0, 0)),
                pl.BlockSpec((1, N1), lambda k: (0, 0)),
                pl.BlockSpec((1, N1), lambda k: (0, 0)),
                pl.BlockSpec((N1, N2p), lambda k: (0, 0)),
                pl.BlockSpec((1, N2p), lambda k: (0, 0)),
            ],
            out_specs=pl.BlockSpec((Mp, N2p), lambda k: (0, 0)),
            scratch_shapes=[pltpu.VMEM((Mp, N1), jnp.float32)],
        ),
        compiler_params=pltpu.CompilerParams(
            dimension_semantics=("arbitrary",),
            vmem_limit_bytes=_VMEM_LIMIT_BYTES),
    )(x_p, w1_p, b1_p, s_p, t_p, w2_p, b2_p)
    return out[:B, :N2]


# ---------------------------------------------------------------------------
# Layer helpers (glue in JAX — fused under the whole-forward jit; MXU work in Pallas)
# ---------------------------------------------------------------------------

def bn_scale_shift(bn, eps=1e-5):
    scale = bn["gamma"] / jnp.sqrt(bn["var"] + eps)
    shift = bn["beta"] - bn["mean"] * scale
    return scale, shift


def _im2col(x, kh, kw, stride, padding):
    """NHWC -> patches (N*Ho*Wo, kh*kw*C), built in bf16."""
    N, H, W, C = x.shape
    Ho = (H + 2 * padding - kh) // stride + 1
    Wo = (W + 2 * padding - kw) // stride + 1
    if padding > 0:
        x = jnp.pad(x, ((0, 0), (padding, padding), (padding, padding), (0, 0)))
    cols = []
    for i in range(kh):
        for j in range(kw):
            cols.append(x[:, i:i + stride * Ho:stride,
                          j:j + stride * Wo:stride, :])
    patches = cols[0] if len(cols) == 1 else jnp.concatenate(cols, axis=-1)
    return patches.reshape(N * Ho * Wo, kh * kw * C), (N, Ho, Wo)


def conv2d_bn(x, w, stride, padding, bn, relu_mode, residual=None,
              keep_padded_cout=False):
    """Conv2d (PyTorch (Cout,Cin,kh,kw) weights, no conv bias) fused with eval-mode
    BatchNorm and optional residual + ReLU epilogue, bf16 activations in/out.

      relu_mode == "post": relu(bn(conv(x)) [+ residual])
      relu_mode == "none":      bn(conv(x)) [+ residual]
      relu_mode == "pre" :      bn(relu(conv(x)))

    If x carries more (zero-padded) channels than the weight's Cin, the weight's Cin
    is zero-padded to match (128-lane channel carry through the 64-ch encoder).
    With keep_padded_cout=True the output keeps its 128-lane channel padding."""
    Cout, Cin, kh, kw = w.shape
    c_act = x.shape[-1]
    if c_act != Cin:
        assert c_act > Cin
        w = jnp.pad(w, ((0, 0), (0, c_act - Cin), (0, 0), (0, 0)))
        Cin = c_act

    scale, shift = bn_scale_shift(bn)
    patches, (N, Ho, Wo) = _im2col(x.astype(jnp.bfloat16), kh, kw,
                                   stride, padding)
    if relu_mode == "pre":
        wmat = jnp.transpose(w, (2, 3, 1, 0)).reshape(kh * kw * Cin, Cout)
        out = matmul_fused(patches, wmat, jnp.zeros((Cout,), jnp.float32),
                           scale=scale, shift=shift, relu_mode="pre",
                           out_dtype=jnp.bfloat16,
                           keep_n_padding=keep_padded_cout)
    else:
        wf = w * scale[:, None, None, None]                 # fold BN scale
        wmat = jnp.transpose(wf, (2, 3, 1, 0)).reshape(kh * kw * Cin, Cout)
        res = (None if residual is None
               else residual.reshape(N * Ho * Wo, residual.shape[-1]))
        out = matmul_fused(patches, wmat, shift, residual=res,
                           relu_mode=relu_mode, out_dtype=jnp.bfloat16,
                           keep_n_padding=keep_padded_cout)
    return out.reshape(N, Ho, Wo, out.shape[-1])


def conv_transpose2d_bn(x, w_t, bn):
    """bn(relu(ConvTranspose2d(k=3, s=2, p=1, output_padding=1, bias=False)(x)))
    via the 4-phase sub-pixel decomposition (single matmul over 4 shifted slices)."""
    Cin, Cout, kh, kw = w_t.shape
    N, H, W, C = x.shape
    assert (kh, kw) == (3, 3) and C == Cin
    scale, shift = bn_scale_shift(bn)

    xb = x.astype(jnp.bfloat16)
    xp = jnp.pad(xb, ((0, 0), (0, 1), (0, 1), (0, 0)))       # bottom/right zero
    a = jnp.concatenate(
        [xp[:, :H, :W, :],              # x[m,   q  ]
         xp[:, :H, 1:W + 1, :],         # x[m,   q+1]
         xp[:, 1:H + 1, :W, :],         # x[m+1, q  ]
         xp[:, 1:H + 1, 1:W + 1, :]],   # x[m+1, q+1]
        axis=-1).reshape(N * H * W, 4 * Cin)

    wk = lambda i, j: w_t[:, :, i, j]                        # (Cin, Cout)
    z = jnp.zeros((Cin, Cout), w_t.dtype)
    # column blocks = output phases [(0,0), (0,1), (1,0), (1,1)]
    wmat = jnp.concatenate([
        jnp.concatenate([wk(1, 1), wk(1, 2), wk(2, 1), wk(2, 2)], axis=1),
        jnp.concatenate([z,        wk(1, 0), z,        wk(2, 0)], axis=1),
        jnp.concatenate([z,        z,        wk(0, 1), wk(0, 2)], axis=1),
        jnp.concatenate([z,        z,        z,        wk(0, 0)], axis=1),
    ], axis=0)                                               # (4*Cin, 4*Cout)

    out = matmul_fused(a, wmat, jnp.zeros((4 * Cout,), jnp.float32),
                       scale=jnp.tile(scale, 4), shift=jnp.tile(shift, 4),
                       relu_mode="pre", out_dtype=jnp.bfloat16)
    out = out.reshape(N, H, W, 2, 2, Cout)
    out = jnp.transpose(out, (0, 1, 3, 2, 4, 5)).reshape(N, 2 * H, 2 * W, Cout)
    return out


def maxpool_3x3_s2_p1(x):
    """MaxPool2d(kernel=3, stride=2, padding=1) — pure data movement, left as fused
    XLA glue (pairwise max over the 9 shifted strided views)."""
    N, H, W, C = x.shape
    Ho = (H + 2 - 3) // 2 + 1
    Wo = (W + 2 - 3) // 2 + 1
    xp = jnp.pad(x, ((0, 0), (1, 1), (1, 1), (0, 0)),
                 constant_values=-jnp.inf)
    out = None
    for i in range(3):
        for j in range(3):
            v = xp[:, i:i + 2 * Ho:2, j:j + 2 * Wo:2, :]
            out = v if out is None else jnp.maximum(out, v)
    return out


def basic_block(x, p, stride, keep_padded=False):
    """ResNet BasicBlock: relu(bn2(conv2(relu(bn1(conv1(x))))) + identity).
    The residual add + final ReLU are fused into the conv2 matmul epilogue."""
    out = conv2d_bn(x, p["conv1"], stride, 1, p["bn1"], "post",
                    keep_padded_cout=keep_padded)
    if "down_conv" in p:
        identity = conv2d_bn(x, p["down_conv"], stride, 0, p["down_bn"], "none",
                             keep_padded_cout=keep_padded)
    else:
        identity = x
    return conv2d_bn(out, p["conv2"], 1, 1, p["bn2"], "post", residual=identity,
                     keep_padded_cout=keep_padded)


def run_layer(x, layer_params, first_stride, keep_padded=False):
    for bi, p in enumerate(layer_params):
        x = basic_block(x, p, stride=first_stride if bi == 0 else 1,
                        keep_padded=keep_padded)
    return x


# ---------------------------------------------------------------------------
# Deterministic parameter construction (synthetic weights)
# ---------------------------------------------------------------------------

class KeyGen:
    def __init__(self, seed):
        self._key = jax.random.PRNGKey(seed)
        self._i = 0

    def __call__(self):
        self._i += 1
        return jax.random.fold_in(self._key, self._i)


def kaiming_conv(key, cout, cin, kh, kw):
    fan_in = cin * kh * kw
    return (jax.random.normal(key, (cout, cin, kh, kw), jnp.float32)
            * np.sqrt(2.0 / fan_in))


def kaiming_deconv(key, cin, cout, kh, kw):
    fan_in = cout * kh * kw
    return (jax.random.normal(key, (cin, cout, kh, kw), jnp.float32)
            * np.sqrt(2.0 / fan_in))


def kaiming_linear(key, out_f, in_f):
    return (jax.random.normal(key, (out_f, in_f), jnp.float32)
            * np.sqrt(2.0 / in_f))


def make_bn(key, c):
    k1, k2, k3, k4 = jax.random.split(key, 4)
    return dict(
        gamma=1.0 + 0.1 * jax.random.normal(k1, (c,), jnp.float32),
        beta=0.1 * jax.random.normal(k2, (c,), jnp.float32),
        mean=0.1 * jax.random.normal(k3, (c,), jnp.float32),
        var=jax.random.uniform(k4, (c,), jnp.float32, 0.5, 1.5),
    )


def make_resnet_layer(kg, cin, cout, nblocks, stride):
    blocks = []
    for b in range(nblocks):
        s = stride if b == 0 else 1
        ic = cin if b == 0 else cout
        p = dict(
            conv1=kaiming_conv(kg(), cout, ic, 3, 3),
            bn1=make_bn(kg(), cout),
            conv2=kaiming_conv(kg(), cout, cout, 3, 3),
            bn2=make_bn(kg(), cout),
        )
        if s != 1 or ic != cout:
            p["down_conv"] = kaiming_conv(kg(), cout, ic, 1, 1)
            p["down_bn"] = make_bn(kg(), cout)
        blocks.append(p)
    return blocks


def make_hourglass_params(seed, fc_in_features):
    kg = KeyGen(seed)
    P = {}
    # init block: conv7x7 s2 p3 (3->64) + BN (+ relu + maxpool in forward)
    P["init"] = dict(conv=kaiming_conv(kg(), 64, 3, 7, 7), bn=make_bn(kg(), 64))
    # resnet34 layers (basic blocks: 3,4,6,3)
    P["layer1"] = make_resnet_layer(kg, 64, 64, 3, 1)
    P["layer2"] = make_resnet_layer(kg, 64, 128, 4, 2)
    P["layer3"] = make_resnet_layer(kg, 128, 256, 6, 2)
    P["layer4"] = make_resnet_layer(kg, 256, 512, 3, 2)
    # decoder (sum_mode=False branch)
    P["deconv1"] = kaiming_deconv(kg(), 512, 256, 3, 3)
    P["deconv2"] = kaiming_deconv(kg(), 512, 128, 3, 3)
    P["deconv3"] = kaiming_deconv(kg(), 256, 64, 3, 3)
    P["conv_block"] = kaiming_conv(kg(), 32, 128, 3, 3)
    P["bn1"] = make_bn(kg(), 256)
    P["bn2"] = make_bn(kg(), 128)
    P["bn3"] = make_bn(kg(), 64)
    P["bn4"] = make_bn(kg(), 32)
    P["bn5"] = make_bn(kg(), 1024)
    P["fc_dim_reduce"] = dict(w=kaiming_linear(kg(), 1024, fc_in_features),
                              b=jnp.zeros((1024,), jnp.float32))
    P["fc_trans"] = dict(w=kaiming_linear(kg(), 3, 1024),
                         b=jnp.zeros((3,), jnp.float32))
    P["fc_rot"] = dict(w=kaiming_linear(kg(), 4, 1024),
                       b=jnp.zeros((4,), jnp.float32))
    return P


# ---------------------------------------------------------------------------
# HourglassBatch forward (sum_mode=False, eval-mode)
# ---------------------------------------------------------------------------

def hourglass_forward(x_nchw, P):
    # input comes in PyTorch NCHW; internally NHWC (channels on the lane dim)
    x = jnp.transpose(x_nchw, (0, 2, 3, 1)).astype(jnp.float32)

    # init block: conv -> bn -> relu -> maxpool.  The 64-channel encoder chain is
    # carried at 128 lanes (zero-padded channels) to avoid slice/re-pad round trips.
    x = conv2d_bn(x, P["init"]["conv"], 2, 3, P["init"]["bn"], "post",
                  keep_padded_cout=True)
    x = maxpool_3x3_s2_p1(x)

    x_res1 = run_layer(x, P["layer1"], 1, keep_padded=True)   # (B,16,16,128), [64:] == 0
    x_res2 = run_layer(x_res1, P["layer2"], 2)                 # Cin weights zero-padded
    x_res3 = run_layer(x_res2, P["layer3"], 2)
    x_res4 = run_layer(x_res3, P["layer4"], 2)

    # decoder: bn(relu(deconv(.)))  then channel-concat with the skip (torch.cat dim=1)
    xd1 = conv_transpose2d_bn(x_res4, P["deconv1"], P["bn1"])
    xd1 = jnp.concatenate([x_res3, xd1], axis=-1)

    xd2 = conv_transpose2d_bn(xd1, P["deconv2"], P["bn2"])
    xd2 = jnp.concatenate([x_res2, xd2], axis=-1)

    xd3 = conv_transpose2d_bn(xd2, P["deconv3"], P["bn3"])
    xd3 = jnp.concatenate([x_res1[..., :64], xd3], axis=-1)   # drop the carried pad

    # conv_block: bn4(relu(conv(.)))
    xc = conv2d_bn(xd3, P["conv_block"], 1, 1, P["bn4"], "pre")

    # flatten exactly like PyTorch's NCHW .view(B, -1)
    B = xc.shape[0]
    x_flat = jnp.transpose(xc, (0, 3, 1, 2)).reshape(B, -1)

    # fc_dim_reduce -> relu -> bn5 -> [dropout: eval identity] -> (fc_trans|fc_rot)
    # all fused into one pallas_call; column order already matches
    # torch.cat((position, rotation), dim=1).
    s5, sh5 = bn_scale_shift(P["bn5"])
    w_heads = jnp.concatenate([P["fc_trans"]["w"], P["fc_rot"]["w"]], axis=0)
    b_heads = jnp.concatenate([P["fc_trans"]["b"], P["fc_rot"]["b"]], axis=0)
    return fc_heads_fused(x_flat, P["fc_dim_reduce"]["w"], P["fc_dim_reduce"]["b"],
                          s5, sh5, w_heads, b_heads)


# ---------------------------------------------------------------------------
# Unit test: 4-phase ConvTranspose2d decomposition vs lax.conv_general_dilated
# ---------------------------------------------------------------------------

def _check_deconv_decomposition():
    k1, k2 = jax.random.split(jax.random.PRNGKey(42))
    Cin, Cout, H, W = 8, 8, 4, 4
    # quantize inputs to bf16 so the only Pallas-vs-reference difference is
    # accumulation order / final bf16 rounding
    x = jax.random.normal(k1, (1, H, W, Cin), jnp.float32)
    w = jax.random.normal(k2, (Cin, Cout, 3, 3), jnp.float32)
    x = x.astype(jnp.bfloat16).astype(jnp.float32)
    w = w.astype(jnp.bfloat16).astype(jnp.float32)

    bn_id = dict(gamma=jnp.ones((Cout,), jnp.float32),
                 beta=jnp.zeros((Cout,), jnp.float32),
                 mean=jnp.zeros((Cout,), jnp.float32),
                 var=jnp.ones((Cout,), jnp.float32) - 1e-5)   # identity BN
    got = conv_transpose2d_bn(x, w, bn_id).astype(jnp.float32)

    # PyTorch ConvTranspose2d(k=3,s=2,p=1,op=1) == conv of the 2x-dilated input,
    # padded (1,2)/(1,2), with the spatially flipped kernel.
    wf = jnp.transpose(w[:, :, ::-1, ::-1], (2, 3, 0, 1))      # (kh,kw,Cin,Cout)
    ref = jax.lax.conv_general_dilated(
        x, wf, window_strides=(1, 1), padding=((1, 2), (1, 2)),
        lhs_dilation=(2, 2), dimension_numbers=("NHWC", "HWIO", "NHWC"))
    ref = jnp.maximum(ref, 0.0).astype(jnp.bfloat16).astype(jnp.float32)

    err = float(jnp.max(jnp.abs(got - ref)))
    scale = float(jnp.max(jnp.abs(ref))) + 1e-6
    assert err <= 0.03 * scale + 1e-3, ("deconv decomposition mismatch", err, scale)


# ---------------------------------------------------------------------------
# Main
# ---------------------------------------------------------------------------

if __name__ == "__main__":
    _check_deconv_decomposition()

    # Small, shape-consistent input: batch=2, RGB, 64x64 spatial.
    # (224x224 in the original; the decoder output spatial is input/4 = 16,
    #  so fc_dim_reduce in-features = 32 * 16 * 16 = 8192.)
    B, C, H, W = 2, 3, 64, 64
    fc_in = 32 * (H // 4) * (W // 4)

    x = jax.random.normal(jax.random.PRNGKey(0), (B, C, H, W), jnp.float32)
    params = make_hourglass_params(seed=1234, fc_in_features=fc_in)

    forward = jax.jit(hourglass_forward)      # single jit over the whole net
    out = jax.block_until_ready(forward(x, params))

    assert out.shape == (B, 7), out.shape
    assert bool(jnp.all(jnp.isfinite(out)))
    print("KERNEL_OK")
</pallas_src>

<mosaic_0001>
module attributes {stable_mosaic.version = 11 : i64} {
  func.func @_matmul_fused_kernel(%arg0: i32, %arg1: i32, %arg2: memref<16x128xbf16, #tpu.memory_space<vmem>>, %arg3: memref<128x128xbf16, #tpu.memory_space<vmem>>, %arg4: memref<1x128xf32, #tpu.memory_space<vmem>>, %arg5: memref<1x128xf32, #tpu.memory_space<vmem>>, %arg6: memref<1x128xf32, #tpu.memory_space<vmem>>, %arg7: memref<16x128xbf16, #tpu.memory_space<vmem>>) attributes {dimension_semantics = [#tpu.dimension_semantics<parallel>, #tpu.dimension_semantics<parallel>], iteration_bounds = array<i64: 1, 1>, scalar_prefetch = 0 : i64, scratch_operands = 0 : i64, tpu.core_type = #tpu.core_type<tc>, window_params = [{transform_indices = @transform_0, window_bounds = array<i64: 16, 128>}, {transform_indices = @transform_1, window_bounds = array<i64: 128, 128>}, {transform_indices = @transform_2, window_bounds = array<i64: 1, 128>}, {transform_indices = @transform_3, window_bounds = array<i64: 1, 128>}, {transform_indices = @transform_4, window_bounds = array<i64: 1, 128>}, {transform_indices = @transform_5, window_bounds = array<i64: 16, 128>}]} {
    %c0 = arith.constant 0 : index
    %c0_0 = arith.constant 0 : index
    %0 = vector.load %arg2[%c0, %c0_0] : memref<16x128xbf16, #tpu.memory_space<vmem>>, vector<16x128xbf16>
    %c0_1 = arith.constant 0 : index
    %c0_2 = arith.constant 0 : index
    %1 = vector.load %arg3[%c0_1, %c0_2] : memref<128x128xbf16, #tpu.memory_space<vmem>>, vector<128x128xbf16>
    %cst = arith.constant dense<0.000000e+00> : vector<16x128xf32>
    %2 = tpu.matmul %0, %1, %cst {dimension_numbers = #tpu.dot_dimension_numbers<[1], [0], [0], [1], [0, 0, 1, 1], [], []>} : vector<16x128xbf16>, vector<128x128xbf16>, vector<16x128xf32> -> vector<16x128xf32>
    %c0_3 = arith.constant 0 : index
    %c0_4 = arith.constant 0 : index
    %3 = vector.load %arg4[%c0_3, %c0_4] : memref<1x128xf32, #tpu.memory_space<vmem>>, vector<1x128xf32>
    %4 = vector.broadcast %3 : vector<1x128xf32> to vector<16x128xf32>
    %5 = arith.addf %2, %4 : vector<16x128xf32>
    %cst_5 = arith.constant 0.000000e+00 : f32
    %6 = vector.broadcast %cst_5 : f32 to vector<16x128xf32>
    %7 = arith.maximumf %5, %6 : vector<16x128xf32>
    %c0_6 = arith.constant 0 : index
    %c0_7 = arith.constant 0 : index
    %8 = vector.load %arg5[%c0_6, %c0_7] : memref<1x128xf32, #tpu.memory_space<vmem>>, vector<1x128xf32>
    %9 = vector.broadcast %8 : vector<1x128xf32> to vector<16x128xf32>
    %10 = arith.mulf %7, %9 : vector<16x128xf32>
    %c0_8 = arith.constant 0 : index
    %c0_9 = arith.constant 0 : index
    %11 = vector.load %arg6[%c0_8, %c0_9] : memref<1x128xf32, #tpu.memory_space<vmem>>, vector<1x128xf32>
    %12 = vector.broadcast %11 : vector<1x128xf32> to vector<16x128xf32>
    %13 = arith.addf %10, %12 : vector<16x128xf32>
    %14 = arith.truncf %13 : vector<16x128xf32> to vector<16x128xbf16>
    %c0_10 = arith.constant 0 : index
    %c0_11 = arith.constant 0 : index
    %15 = vector.load %arg7[%c0_10, %c0_11] : memref<16x128xbf16, #tpu.memory_space<vmem>>, vector<16x128xbf16>
    tpu.vector_store %arg7[%c0_10, %c0_11], %14 {strides = array<i32>} : memref<16x128xbf16, #tpu.memory_space<vmem>>, vector<16x128xbf16>,
    return
  }
  func.func @transform_0(%arg0: i32, %arg1: i32) -> (i32, i32) {
    %c0_i32 = arith.constant 0 : i32
    %c0_i32_0 = arith.constant 0 : i32
    return %arg0, %c0_i32 : i32, i32
  }
  func.func @transform_1(%arg0: i32, %arg1: i32) -> (i32, i32) {
    %c0_i32 = arith.constant 0 : i32
    %c0_i32_0 = arith.constant 0 : i32
    return %c0_i32, %arg1 : i32, i32
  }
  func.func @transform_2(%arg0: i32, %arg1: i32) -> (i32, i32) {
    %c0_i32 = arith.constant 0 : i32
    %c0_i32_0 = arith.constant 0 : i32
    return %c0_i32, %arg1 : i32, i32
  }
  func.func @transform_3(%arg0: i32, %arg1: i32) -> (i32, i32) {
    %c0_i32 = arith.constant 0 : i32
    %c0_i32_0 = arith.constant 0 : i32
    return %c0_i32, %arg1 : i32, i32
  }
  func.func @transform_4(%arg0: i32, %arg1: i32) -> (i32, i32) {
    %c0_i32 = arith.constant 0 : i32
    %c0_i32_0 = arith.constant 0 : i32
    return %c0_i32, %arg1 : i32, i32
  }
  func.func @transform_5(%arg0: i32, %arg1: i32) -> (i32, i32) {
    %c0_i32 = arith.constant 0 : i32
    return %arg0, %arg1 : i32, i32
  }
}

</mosaic_0001>

<llo_original>
// kernel: tpu_custom_call.1
$region0: #{tpu_custom_call.1}
  #allocation0 [shape = 'u32[]', space=smem, size = 0x4, offset = 0x4, fixed_abs, tag = 'smem constant byte address 0x4 - core index']
  #allocation1 [shape = 'u32[72,128]{1,0:T(1,128)}', space=vmem, size = 0x9000, scoped, tag = 'internal scratch']
  %s0 = inlined_call_operand.hbm [shape: bf16[16,128], index: 0, kind: input, shape index: {}]
  %s1 = inlined_call_operand.hbm [shape: bf16[128,128], index: 1, kind: input, shape index: {}]
  %s2 = inlined_call_operand.vmem [shape: f32[1,128], index: 2, kind: input, shape index: {}]
  %s3 = inlined_call_operand.vmem [shape: f32[1,128], index: 3, kind: input, shape index: {}]
  %s4 = inlined_call_operand.vmem [shape: f32[1,128], index: 4, kind: input, shape index: {}]
  %s5 = inlined_call_operand.hbm [shape: bf16[16,128], index: 5, kind: output, shape index: {}]
  %s6 = sld [smem:[#allocation0]]
  $region38: #{tpu_custom_call.1} parent=0
    _
  %s8 = ssub.s32 1, %s6
  %s9 = scalar_select 0, %s8, %s6
  $region1: #{tpu_custom_call.1} parent=0
    #allocation2 [shape = 'u8[4096]{0}', space=vmem, size = 0x1000, scoped, tag = 'input window, operand 0, single buffered']
    #allocation3 [shape = 's32[1]{0}', space=sflag, size = 0x4, scoped, tag = 'scoped memory for tpu_custom_call.1']
    #allocation4 [shape = 's32[1]{0}', space=sflag, size = 0x4, scoped, tag = 'scoped memory for tpu_custom_call.1']
    #allocation5 [shape = 'u8[32768]{0}', space=vmem, size = 0x8000, scoped, tag = 'input window, operand 1, single buffered']
    #allocation6 [shape = 's32[1]{0}', space=sflag, size = 0x4, scoped, tag = 'scoped memory for tpu_custom_call.1']
    #allocation7 [shape = 'u8[4096]{0}', space=vmem, size = 0x1000, scoped, tag = 'output window, operand 0, single buffered']
    %10 = vsyncpa [#allocation3], 0
    %11 = vsyncpa [#allocation6], 0
    %12 = vsyncpa [#allocation4], 0
    // Predicated region
    $region2: #{tpu_custom_call.1} parent=1 // pred_check
      _
    $region3: #{tpu_custom_call.1} parent=1 // pred_check_branch
      %14 = sbr.rel (0) target = $region5
    $region4: #{tpu_custom_call.1} parent=1 // pred_region
      %16 = vsyncadd [#allocation3], 0
      %s17 = sshll.u32 %s0, 4
      %s18 = int_to_ptr.hbm [resolvable:$true] %s17
      %s19 = sshll.u32 [#allocation2], 4
      %s20 = int_to_ptr.vmem [resolvable:$true] %s19
      %25 = dma.hbm_to_vmem [thread:$0]  %s18, 128, %s20, [#allocation3], 64, 64, 4
    $region5: #{tpu_custom_call.1} parent=1 // pred_fallthru
      _
    // Predicated region
    $region6: #{tpu_custom_call.1} parent=1 // pred_check
      _
    $region7: #{tpu_custom_call.1} parent=1 // pred_check_branch
      %27 = sbr.rel (0) target = $region9
    $region8: #{tpu_custom_call.1} parent=1 // pred_region
      %29 = vsyncadd [#allocation6], 0
      %s30 = sshll.u32 %s1, 4
      %s31 = int_to_ptr.hbm [resolvable:$true] %s30
      %s32 = sshll.u32 [#allocation5], 4
      %s33 = int_to_ptr.vmem [resolvable:$true] %s32
      %38 = dma.hbm_to_vmem [thread:$0]  %s31, 1024, %s33, [#allocation6], 64, 64, 4
    $region9: #{tpu_custom_call.1} parent=1 // pred_fallthru
      _
    // Predicated region
    $region10: #{tpu_custom_call.1} parent=1 // pred_check
      _
    $region11: #{tpu_custom_call.1} parent=1 // pred_check_branch
      %40 = sbr.rel (0) target = $region13
    $region12: #{tpu_custom_call.1} parent=1 // pred_region
      _
    $region13: #{tpu_custom_call.1} parent=1 // pred_fallthru
      _
    // Predicated region
    $region14: #{tpu_custom_call.1} parent=1 // pred_check
      _
    $region15: #{tpu_custom_call.1} parent=1 // pred_check_branch
      %42 = sbr.rel (0) target = $region17
    $region16: #{tpu_custom_call.1} parent=1 // pred_region
      _
    $region17: #{tpu_custom_call.1} parent=1 // pred_fallthru
      _
    // Predicated region
    $region18: #{tpu_custom_call.1} parent=1 // pred_check
      _
    $region19: #{tpu_custom_call.1} parent=1 // pred_check_branch
      %44 = sbr.rel (0) target = $region21
    $region20: #{tpu_custom_call.1} parent=1 // pred_region
      _
    $region21: #{tpu_custom_call.1} parent=1 // pred_fallthru
      _
    // Predicated region
    $region22: #{tpu_custom_call.1} parent=1 // pred_check
      _
    $region23: #{tpu_custom_call.1} parent=1 // pred_check_branch
      %46 = sbr.rel (0) target = $region25
    $region24: #{tpu_custom_call.1} parent=1 // pred_region
      %48 = dma.done [#allocation3], 128
    $region25: #{tpu_custom_call.1} parent=1 // pred_fallthru
      _
    // Predicated region
    $region26: #{tpu_custom_call.1} parent=1 // pred_check
      _
    $region27: #{tpu_custom_call.1} parent=1 // pred_check_branch
      %50 = sbr.rel (0) target = $region29
    $region28: #{tpu_custom_call.1} parent=1 // pred_region
      %52 = dma.done [#allocation6], 1024
    $region29: #{tpu_custom_call.1} parent=1 // pred_fallthru
      _
    %v53 = vld [vmem:[#allocation2] sm:$0xf]
    %v54 = vld [vmem:[#allocation2 + $0x4] sm:$0xf]
    %v55 = vld [vmem:[#allocation5] sm:$0xf]
    %v56 = vld [vmem:[#allocation5 + $0x4] sm:$0xf]
    %v57 = vld [vmem:[#allocation5 + $0x8] sm:$0xf]
    %v58 = vld [vmem:[#allocation5 + $0xc] sm:$0xf]
    %v59 = vld [vmem:[#allocation5 + $0x10] sm:$0xf]
    %v60 = vld [vmem:[#allocation5 + $0x14] sm:$0xf]
    %v61 = vld [vmem:[#allocation5 + $0x18] sm:$0xf]
    %v62 = vld [vmem:[#allocation5 + $0x1c] sm:$0xf]
    %v63 = vld [vmem:[#allocation5 + $0x20] sm:$0xf]
    %v64 = vld [vmem:[#allocation5 + $0x24] sm:$0xf]
    %v65 = vld [vmem:[#allocation5 + $0x28] sm:$0xf]
    %v66 = vld [vmem:[#allocation5 + $0x2c] sm:$0xf]
    %v67 = vld [vmem:[#allocation5 + $0x30] sm:$0xf]
    %v68 = vld [vmem:[#allocation5 + $0x34] sm:$0xf]
    %v69 = vld [vmem:[#allocation5 + $0x38] sm:$0xf]
    %v70 = vld [vmem:[#allocation5 + $0x3c] sm:$0xf]
    %v71 = vld [vmem:[%s2] sm:$0x1]
    %v73 = vperm.slane %v71, 0
    %v77 = vunpack.c.l.b16 %v53
    %v78 = vunpack.c.l.b16 %v54
    %v79 = vpack.c.b16 %v78, %v77
    %v97 = vunpack.c.l.b16 %v55
    %v98 = vunpack.c.l.b16 %v56
    %v99 = vunpack.c.l.b16 %v57
    %v100 = vunpack.c.l.b16 %v58
    %v101 = vunpack.c.l.b16 %v59
    %v102 = vunpack.c.l.b16 %v60
    %v103 = vunpack.c.l.b16 %v61
    %v104 = vunpack.c.l.b16 %v62
    %v105 = vunpack.c.l.b16 %v63
    %v106 = vunpack.c.l.b16 %v64
    %v107 = vunpack.c.l.b16 %v65
    %v108 = vunpack.c.l.b16 %v66
    %v109 = vunpack.c.l.b16 %v67
    %v110 = vunpack.c.l.b16 %v68
    %v111 = vunpack.c.l.b16 %v69
    %v112 = vunpack.c.l.b16 %v70
    %v113 = vpack.c.b16 %v98, %v97
    %v114 = vpack.c.b16 %v100, %v99
    %v115 = vpack.c.b16 %v102, %v101
    %v116 = vpack.c.b16 %v104, %v103
    %v117 = vpack.c.b16 %v106, %v105
    %v118 = vpack.c.b16 %v108, %v107
    %v119 = vpack.c.b16 %v110, %v109
    %v120 = vpack.c.b16 %v112, %v111
    %129 = vmatpush.bf16.msra.mxu0 %v120
    %130 = vmatpush.bf16.msra.mxu0 %v119
    %131 = vmatpush.bf16.msra.mxu0 %v118
    %132 = vmatpush.bf16.msra.mxu0 %v117
    %133 = vmatpush.bf16.msra.mxu0 %v116
    %134 = vmatpush.bf16.msra.mxu0 %v115
    %135 = vmatpush.bf16.msra.mxu0 %v114
    %136 = vmatpush.bf16.msra.mxu0 %v113
    %137 = vmatmul.bf16.gmra.mxu0 %v79
    %v138 = vpop.f32.mrf.mxu0
    %v139 = vadd.f32 %v73, %v138
    %v140 = vpop.f32.mrf.mxu0
    %v141 = vadd.f32 %v73, %v140
    %142 = vdwg.mxu0
    %v143 = vmax.f32 %v139, 0.0
    %v144 = vmax.f32 %v141, 0.0
    %v145 = vld [vmem:[%s3] sm:$0x1]
    %v147 = vperm.slane %v145, 0
    %v149 = vmul.f32 %v143, %v147
    %v150 = vmul.f32 %v144, %v147
    %v151 = vld [vmem:[%s4] sm:$0x1]
    %v153 = vperm.slane %v151, 0
    %v155 = vadd.f32 %v149, %v153
    %v156 = vadd.f32 %v150, %v153
    %v157 = vpack.c.bf16 %v155, %v155
    %v158 = vpack.c.bf16 %v156, %v156
    %159 = vst [vmem:[#allocation7] sm:$0xf] %v157
    %160 = vst [vmem:[#allocation7 + $0x4] sm:$0xf] %v158
    // Predicated region
    $region30: #{tpu_custom_call.1} parent=1 // pred_check
      _
    $region31: #{tpu_custom_call.1} parent=1 // pred_check_branch
      %162 = sbr.rel (0) target = $region33
    $region32: #{tpu_custom_call.1} parent=1 // pred_region
      %164 = vsyncadd [#allocation4], 0
      %s165 = sshll.u32 [#allocation7], 4
      %s166 = int_to_ptr.vmem [resolvable:$true] %s165
      %s167 = sshll.u32 %s5, 4
      %s168 = int_to_ptr.hbm [resolvable:$true] %s167
      %173 = dma.vmem_to_hbm [thread:$0]  %s166, 128, %s168, [#allocation4], 64, 64, 4
    $region33: #{tpu_custom_call.1} parent=1 // pred_fallthru
      _
    // Predicated region
    $region34: #{tpu_custom_call.1} parent=1 // pred_check
      _
    $region35: #{tpu_custom_call.1} parent=1 // pred_check_branch
      %175 = sbr.rel (0) target = $region37
    $region36: #{tpu_custom_call.1} parent=1 // pred_region
      %177 = dma.done [#allocation4], 128
    $region37: #{tpu_custom_call.1} parent=1 // pred_fallthru
      _
    %178 = vsyncpa [#allocation3], 1
    %179 = vsyncpa [#allocation6], 1
    %180 = vsyncpa [#allocation4], 1

</llo_original>
